<compile_context>
chip_gen: v5e
topology: v5e:2x2
jax: 0.10.0
libtpu: 0.0.40
codegen_flags: <defaults>
</compile_context>

<pallas_src>
import functools
import math

import jax
import jax.numpy as jnp
from jax.experimental import pallas as pl
from jax.experimental.pallas import tpu as pltpu


def _round_up(a: int, b: int) -> int:
    return ((a + b - 1) // b) * b


def _act(h, leak):
    # LeakyReLU with a trace-time leak constant. leak == 0.0 uses jnp.maximum
    # (avoids the 0 * (-inf) -> NaN hazard of the where form).
    if leak == 0.0:
        return jnp.maximum(h, 0.0)
    return jnp.where(h > 0, h, leak * h)


def _dnet_kernel_fused(x_ref, w1_ref, w2_ref, out_ref, out_acc, *, leak):
    # grid = (c, i, j); whole F_in fits one block (nk == 1).
    # x_ref : (tm, Fin_pad) bf16   (block index: i, 0)
    # w1_ref: (Fin_pad, th) bf16   (block index: 0, c*nj + j)
    # w2_ref: (th, 128)     bf16   (block index: c*nj + j, 0)
    # out_ref:(tm, 128)     f32    (block index: c, i, 0) -- constant across j
    j = pl.program_id(2)
    nj = pl.num_programs(2)

    @pl.when(j == 0)
    def _():
        out_acc[...] = jnp.zeros_like(out_acc)

    h = jnp.dot(x_ref[...], w1_ref[...], preferred_element_type=jnp.float32)
    h = _act(h, leak)
    out_acc[...] += jnp.dot(h.astype(jnp.bfloat16), w2_ref[...],
                            preferred_element_type=jnp.float32)

    @pl.when(j == nj - 1)
    def _():
        out_ref[...] = out_acc[...].astype(out_ref.dtype)


def _dnet_kernel_ktiled(x_ref, w1_ref, w2_ref, out_ref, h_acc, out_acc, *, leak):
    # grid = (c, i, j, k); F_in split over k, F_hid split over (c, j).
    j = pl.program_id(2)
    k = pl.program_id(3)
    nj = pl.num_programs(2)
    nk = pl.num_programs(3)

    @pl.when((j == 0) & (k == 0))
    def _():
        out_acc[...] = jnp.zeros_like(out_acc)

    @pl.when(k == 0)
    def _():
        h_acc[...] = jnp.zeros_like(h_acc)

    # First matmul partial: bf16 x bf16 -> f32 accumulation on the MXU.
    h_acc[...] += jnp.dot(x_ref[...], w1_ref[...],
                          preferred_element_type=jnp.float32)

    @pl.when(k == nk - 1)
    def _():
        h = _act(h_acc[...], leak)
        out_acc[...] += jnp.dot(h.astype(jnp.bfloat16), w2_ref[...],
                                preferred_element_type=jnp.float32)

    @pl.when((j == nj - 1) & (k == nk - 1))
    def _():
        out_ref[...] = out_acc[...].astype(out_ref.dtype)


def prepare_dnet_params(w1, w2, *, tk_max=4096, th_max=1024):
    """One-time setup (hoisted out of the per-call forward path): cast the
    EqualizedLinear weights to bf16 and pad to tile-aligned shapes (padding is a
    no-op when dims are already multiples of the tile sizes)."""
    F_in, F_hid = w1.shape
    assert w2.shape[0] == F_hid
    n_out = w2.shape[1]

    tk = min(tk_max, _round_up(F_in, 128))     # tk == Fin_pad when F_in <= tk_max -> nk == 1
    th = min(th_max, _round_up(F_hid, 128))
    Fin_pad = _round_up(F_in, tk)
    Fhid_pad = _round_up(F_hid, th)
    n_out_pad = _round_up(n_out, 128)          # lane-dense output, sliced in the wrapper

    w1_b = w1.astype(jnp.bfloat16)
    w2_b = w2.astype(jnp.bfloat16)
    if (Fin_pad, Fhid_pad) != (F_in, F_hid):
        w1_b = jnp.zeros((Fin_pad, Fhid_pad), jnp.bfloat16).at[:F_in, :F_hid].set(w1_b)
    if (Fhid_pad, n_out_pad) != (F_hid, n_out):
        w2_b = jnp.zeros((Fhid_pad, n_out_pad), jnp.bfloat16).at[:F_hid, :n_out].set(w2_b)

    return dict(w1=w1_b, w2=w2_b, F_in=F_in, F_hid=F_hid, n_out=n_out, tk=tk, th=th)


def dnet_forward(x_nchw, params, *, leak=0.0, tm_max=256):
    """x_nchw: (B, C, H, W) with C*H*W == F_in; params from prepare_dnet_params."""
    w1_p, w2_p = params["w1"], params["w2"]
    F_in, n_out = params["F_in"], params["n_out"]
    tk, th = params["tk"], params["th"]
    Fin_pad, Fhid_pad = w1_p.shape
    n_out_pad = w2_p.shape[1]

    B = x_nchw.shape[0]
    xf = x_nchw.reshape(B, -1)                 # == torch x.view(-1, num_flat_features(x))
    assert xf.shape[1] == F_in

    tm = min(tm_max, _round_up(B, 16))
    B_pad = _round_up(B, tm)

    x_b = xf.astype(jnp.bfloat16)
    if (B_pad, Fin_pad) != (B, F_in):
        # Zero-padding keeps the math exact (padded rows/cols contribute 0).
        x_b = jnp.zeros((B_pad, Fin_pad), jnp.bfloat16).at[:B, :F_in].set(x_b)

    n_i = B_pad // tm
    n_j_total = Fhid_pad // th
    n_k = Fin_pad // tk

    # v7x has 2 TensorCores: make sure the parallel part of the grid has >= 2
    # iterations. If the batch-tile axis is a single iteration, split F_hid across
    # a leading parallel axis; per-split partial outputs are summed in the wrapper.
    split = 2 if (n_i < 2 and n_j_total >= 2 and n_j_total % 2 == 0) else 1
    nj = n_j_total // split

    if n_k == 1:
        kernel = functools.partial(_dnet_kernel_fused, leak=leak)
        grid = (split, n_i, nj)
        in_specs = [
            pl.BlockSpec((tm, tk), lambda c, i, j: (i, 0)),                     # x panel
            pl.BlockSpec((tk, th), lambda c, i, j: (0, c * nj + j)),            # w1
            pl.BlockSpec((th, n_out_pad), lambda c, i, j: (c * nj + j, 0)),     # w2
        ]
        out_spec = pl.BlockSpec((None, tm, n_out_pad), lambda c, i, j: (c, i, 0))
        scratch = [pltpu.VMEM((tm, n_out_pad), jnp.float32)]                    # out_acc
        dim_sem = ("parallel", "parallel", "arbitrary")
    else:
        kernel = functools.partial(_dnet_kernel_ktiled, leak=leak)
        grid = (split, n_i, nj, n_k)
        in_specs = [
            pl.BlockSpec((tm, tk), lambda c, i, j, k: (i, k)),                  # x
            pl.BlockSpec((tk, th), lambda c, i, j, k: (k, c * nj + j)),         # w1
            pl.BlockSpec((th, n_out_pad), lambda c, i, j, k: (c * nj + j, 0)),  # w2
        ]
        out_spec = pl.BlockSpec((None, tm, n_out_pad), lambda c, i, j, k: (c, i, 0))
        scratch = [pltpu.VMEM((tm, th), jnp.float32),                           # h_acc
                   pltpu.VMEM((tm, n_out_pad), jnp.float32)]                    # out_acc
        dim_sem = ("parallel", "parallel", "arbitrary", "arbitrary")

    out_p = pl.pallas_call(
        kernel,
        out_shape=jax.ShapeDtypeStruct((split, B_pad, n_out_pad), jnp.float32),
        grid=grid,
        in_specs=in_specs,
        out_specs=out_spec,
        scratch_shapes=scratch,
        compiler_params=pltpu.CompilerParams(
            dimension_semantics=dim_sem,
            # ~22 MiB double-buffered working set at the largest tiles; raise v5e's
            # 16 MiB scoped default while staying well under v7x's 64 MiB physical.
            vmem_limit_bytes=32 * 1024 * 1024,
        ),
    )(x_b, w1_p, w2_p)

    out = out_p.sum(axis=0) if split > 1 else out_p[0]
    return out[:B, :n_out]


def make_params(key, depth_scale0, size_decision_layer=1):
    """Deterministic EqualizedLinear parameters (N(0,1) * sqrt(2/fan_in)), no bias."""
    k1, k2 = jax.random.split(key)
    f_in = depth_scale0 * 16
    f_hid = depth_scale0 * 64
    # PyTorch stores Linear weights as (out, in); build that way, scale, transpose.
    w1_raw = jax.random.normal(k1, (f_hid, f_in), dtype=jnp.float32)
    w2_raw = jax.random.normal(k2, (size_decision_layer, f_hid), dtype=jnp.float32)
    w1 = (w1_raw * math.sqrt(2.0 / f_in)).T          # (F_in, F_hid)
    w2 = (w2_raw * math.sqrt(2.0 / f_hid)).T         # (F_hid, n_out)
    return w1, w2


def _reference(x, w1, w2, leak=0.0):
    # Pure-JAX reference with matching bf16 operand rounding and f32 accumulation.
    xf = x.reshape(x.shape[0], -1).astype(jnp.bfloat16)
    h = jnp.dot(xf, w1.astype(jnp.bfloat16), preferred_element_type=jnp.float32)
    h = jnp.maximum(h, 0.0) if leak == 0.0 else jnp.where(h > 0, h, leak * h)
    return jnp.dot(h.astype(jnp.bfloat16), w2.astype(jnp.bfloat16),
                   preferred_element_type=jnp.float32)


if __name__ == "__main__":
    key = jax.random.PRNGKey(0)
    k1, k2, k3, k4 = jax.random.split(key, 4)

    # --- Test 1: default tiles -> fused (nk == 1) path --------------------------
    depth_scale0 = 8          # depthScale0
    batch = 2
    size_decision = 1         # sizeDecisionLayer

    # NCHW input whose flattened feature count equals depthScale0*16 (C=depth0, H=W=4).
    x = jax.random.normal(k1, (batch, depth_scale0, 4, 4), dtype=jnp.float32)
    w1, w2 = make_params(k2, depth_scale0, size_decision)
    params = prepare_dnet_params(w1, w2)          # hoisted cast/pad (done once)

    out = jax.block_until_ready(dnet_forward(x, params))
    ref = _reference(x, w1, w2)
    assert out.shape == (batch, size_decision)
    assert jnp.allclose(out, ref, rtol=2e-2, atol=2e-2), "mismatch vs reference (fused path)"

    # --- Test 2: tiny tiles -> exercise k-tiled path + v7x-style F_hid split ----
    depth_scale0_b = 16
    x_b = jax.random.normal(k3, (batch, depth_scale0_b, 4, 4), dtype=jnp.float32)
    w1_b, w2_b = make_params(k4, depth_scale0_b, size_decision)
    params_b = prepare_dnet_params(w1_b, w2_b, tk_max=128, th_max=128)

    out_b = jax.block_until_ready(dnet_forward(x_b, params_b))
    ref_b = _reference(x_b, w1_b, w2_b)
    assert out_b.shape == (batch, size_decision)
    assert jnp.allclose(out_b, ref_b, rtol=2e-2, atol=2e-2), "mismatch vs reference (k-tiled path)"

    print("KERNEL_OK")
</pallas_src>

<mosaic_0001>
module attributes {stable_mosaic.version = 11 : i64} {
  func.func @_dnet_kernel_fused(%arg0: i32, %arg1: i32, %arg2: i32, %arg3: memref<16x128xbf16, #tpu.memory_space<vmem>>, %arg4: memref<128x512xbf16, #tpu.memory_space<vmem>>, %arg5: memref<512x128xbf16, #tpu.memory_space<vmem>>, %arg6: memref<1x16x128xf32, #tpu.memory_space<vmem>>, %arg7: memref<16x128xf32, #tpu.memory_space<vmem>>) attributes {dimension_semantics = [#tpu.dimension_semantics<parallel>, #tpu.dimension_semantics<parallel>, #tpu.dimension_semantics<arbitrary>], iteration_bounds = array<i64: 1, 1, 1>, scalar_prefetch = 0 : i64, scratch_operands = 1 : i64, tpu.core_type = #tpu.core_type<tc>, window_params = [{transform_indices = @transform_0, window_bounds = array<i64: 16, 128>}, {transform_indices = @transform_1, window_bounds = array<i64: 128, 512>}, {transform_indices = @transform_2, window_bounds = array<i64: 512, 128>}, {transform_indices = @transform_3, window_bounds = array<i64: 1, 16, 128>}]} {
    %c0_i32 = arith.constant 0 : i32
    %0 = arith.cmpi eq, %arg2, %c0_i32 : i32
    %1 = arith.extui %0 : i1 to i32
    %c0_i32_0 = arith.constant 0 : i32
    %2 = arith.cmpi ne, %1, %c0_i32_0 : i32
    scf.if %2 {
      %cst_14 = arith.constant 0.000000e+00 : f32
      %17 = vector.broadcast %cst_14 : f32 to vector<16x128xf32>
      %c0_15 = arith.constant 0 : index
      %c0_16 = arith.constant 0 : index
      %18 = vector.load %arg7[%c0_15, %c0_16] : memref<16x128xf32, #tpu.memory_space<vmem>>, vector<16x128xf32>
      tpu.vector_store %arg7[%c0_15, %c0_16], %17 {strides = array<i32>} : memref<16x128xf32, #tpu.memory_space<vmem>>, vector<16x128xf32>,
    } else {
    }
    %c0 = arith.constant 0 : index
    %c0_1 = arith.constant 0 : index
    %3 = vector.load %arg3[%c0, %c0_1] : memref<16x128xbf16, #tpu.memory_space<vmem>>, vector<16x128xbf16>
    %c0_2 = arith.constant 0 : index
    %c0_3 = arith.constant 0 : index
    %4 = vector.load %arg4[%c0_2, %c0_3] : memref<128x512xbf16, #tpu.memory_space<vmem>>, vector<128x512xbf16>
    %cst = arith.constant dense<0.000000e+00> : vector<16x512xf32>
    %5 = tpu.matmul %3, %4, %cst {dimension_numbers = #tpu.dot_dimension_numbers<[1], [0], [0], [1], [0, 0, 1, 1], [], []>} : vector<16x128xbf16>, vector<128x512xbf16>, vector<16x512xf32> -> vector<16x512xf32>
    %cst_4 = arith.constant 0.000000e+00 : f32
    %6 = vector.broadcast %cst_4 : f32 to vector<16x512xf32>
    %7 = arith.maximumf %5, %6 : vector<16x512xf32>
    %c0_5 = arith.constant 0 : index
    %c0_6 = arith.constant 0 : index
    %8 = vector.load %arg7[%c0_5, %c0_6] : memref<16x128xf32, #tpu.memory_space<vmem>>, vector<16x128xf32>
    %9 = arith.truncf %7 : vector<16x512xf32> to vector<16x512xbf16>
    %c0_7 = arith.constant 0 : index
    %c0_8 = arith.constant 0 : index
    %10 = vector.load %arg5[%c0_7, %c0_8] : memref<512x128xbf16, #tpu.memory_space<vmem>>, vector<512x128xbf16>
    %cst_9 = arith.constant dense<0.000000e+00> : vector<16x128xf32>
    %11 = tpu.matmul %9, %10, %cst_9 {dimension_numbers = #tpu.dot_dimension_numbers<[1], [0], [0], [1], [0, 0, 1, 1], [], []>} : vector<16x512xbf16>, vector<512x128xbf16>, vector<16x128xf32> -> vector<16x128xf32>
    %12 = arith.addf %8, %11 : vector<16x128xf32>
    %c0_10 = arith.constant 0 : index
    %c0_11 = arith.constant 0 : index
    %13 = vector.load %arg7[%c0_10, %c0_11] : memref<16x128xf32, #tpu.memory_space<vmem>>, vector<16x128xf32>
    tpu.vector_store %arg7[%c0_10, %c0_11], %12 {strides = array<i32>} : memref<16x128xf32, #tpu.memory_space<vmem>>, vector<16x128xf32>,
    %c0_i32_12 = arith.constant 0 : i32
    %14 = arith.cmpi eq, %arg2, %c0_i32_12 : i32
    %15 = arith.extui %14 : i1 to i32
    %c0_i32_13 = arith.constant 0 : i32
    %16 = arith.cmpi ne, %15, %c0_i32_13 : i32
    scf.if %16 {
      %c0_14 = arith.constant 0 : index
      %c0_15 = arith.constant 0 : index
      %17 = vector.load %arg7[%c0_14, %c0_15] : memref<16x128xf32, #tpu.memory_space<vmem>>, vector<16x128xf32>
      %c0_16 = arith.constant 0 : index
      %c0_17 = arith.constant 0 : index
      %c0_18 = arith.constant 0 : index
      %18 = vector.load %arg6[%c0_16, %c0_17, %c0_18] : memref<1x16x128xf32, #tpu.memory_space<vmem>>, vector<1x16x128xf32>
      %19 = vector.shape_cast %18 : vector<1x16x128xf32> to vector<16x128xf32>
      %20 = vector.shape_cast %17 : vector<16x128xf32> to vector<1x16x128xf32>
      tpu.vector_store %arg6[%c0_16, %c0_17, %c0_18], %20 {strides = array<i32>} : memref<1x16x128xf32, #tpu.memory_space<vmem>>, vector<1x16x128xf32>,
    } else {
    }
    return
  }
  func.func @transform_0(%arg0: i32, %arg1: i32, %arg2: i32) -> (i32, i32) {
    %c0_i32 = arith.constant 0 : i32
    %c0_i32_0 = arith.constant 0 : i32
    return %arg1, %c0_i32 : i32, i32
  }
  func.func @transform_1(%arg0: i32, %arg1: i32, %arg2: i32) -> (i32, i32) {
    %c1_i32 = arith.constant 1 : i32
    %0 = arith.muli %arg0, %c1_i32 : i32
    %1 = arith.addi %0, %arg2 : i32
    %c0_i32 = arith.constant 0 : i32
    %c0_i32_0 = arith.constant 0 : i32
    return %c0_i32, %1 : i32, i32
  }
  func.func @transform_2(%arg0: i32, %arg1: i32, %arg2: i32) -> (i32, i32) {
    %c1_i32 = arith.constant 1 : i32
    %0 = arith.muli %arg0, %c1_i32 : i32
    %1 = arith.addi %0, %arg2 : i32
    %c0_i32 = arith.constant 0 : i32
    %c0_i32_0 = arith.constant 0 : i32
    return %1, %c0_i32 : i32, i32
  }
  func.func @transform_3(%arg0: i32, %arg1: i32, %arg2: i32) -> (i32, i32, i32) {
    %c0_i32 = arith.constant 0 : i32
    %c0_i32_0 = arith.constant 0 : i32
    return %arg0, %arg1, %c0_i32 : i32, i32, i32
  }
}

</mosaic_0001>

<llo_original>
// kernel: tpu_custom_call.1
$region0: #{tpu_custom_call.1}
  #allocation0 [shape = 'u32[]', space=smem, size = 0x4, offset = 0x4, fixed_abs, tag = 'smem constant byte address 0x4 - core index']
  #allocation1 [shape = 'u32[72,128]{1,0:T(1,128)}', space=vmem, size = 0x9000, scoped, tag = 'internal scratch']
  #allocation2 [shape = 'f32[16,128]{1,0:T(8,128)}', space=vmem, size = 0x2000, scoped, tag = 'scratch operand']
  %s0 = inlined_call_operand.hbm [shape: bf16[16,128], index: 0, kind: input, shape index: {}]
  %s1 = inlined_call_operand.hbm [shape: bf16[128,512], index: 1, kind: input, shape index: {}]
  %s2 = inlined_call_operand.hbm [shape: bf16[512,128], index: 2, kind: input, shape index: {}]
  %s3 = inlined_call_operand.hbm [shape: f32[1,16,128], index: 3, kind: output, shape index: {}]
  %s4 = sld [smem:[#allocation0]]
  $region42: #{tpu_custom_call.1} parent=0
    _
  %s6 = ssub.s32 1, %s4
  %s7 = scalar_select 0, %s6, %s4
  $region1: #{tpu_custom_call.1} parent=0
    #allocation3 [shape = 'u8[4096]{0}', space=vmem, size = 0x1000, scoped, tag = 'input window, operand 0, single buffered']
    #allocation4 [shape = 's32[1]{0}', space=sflag, size = 0x4, scoped, tag = 'scoped memory for tpu_custom_call.1']
    #allocation5 [shape = 's32[1]{0}', space=sflag, size = 0x4, scoped, tag = 'scoped memory for tpu_custom_call.1']
    #allocation6 [shape = 'u8[131072]{0}', space=vmem, size = 0x20000, scoped, tag = 'input window, operand 1, single buffered']
    #allocation7 [shape = 's32[1]{0}', space=sflag, size = 0x4, scoped, tag = 'scoped memory for tpu_custom_call.1']
    #allocation8 [shape = 'u8[131072]{0}', space=vmem, size = 0x20000, scoped, tag = 'input window, operand 2, single buffered']
    #allocation9 [shape = 'u8[8192]{0}', space=vmem, size = 0x2000, scoped, tag = 'output window, operand 0, single buffered']
    %8 = vsyncpa [#allocation4], 0
    %9 = vsyncpa [#allocation7], 0
    %10 = vsyncpa [#allocation5], 0
    // Predicated region
    $region2: #{tpu_custom_call.1} parent=1 // pred_check
      _
    $region3: #{tpu_custom_call.1} parent=1 // pred_check_branch
      %12 = sbr.rel (0) target = $region5
    $region4: #{tpu_custom_call.1} parent=1 // pred_region
      %14 = vsyncadd [#allocation4], 0
      %s15 = sshll.u32 %s0, 4
      %s16 = int_to_ptr.hbm [resolvable:$true] %s15
      %s17 = sshll.u32 [#allocation3], 4
      %s18 = int_to_ptr.vmem [resolvable:$true] %s17
      %23 = dma.hbm_to_vmem [thread:$0]  %s16, 128, %s18, [#allocation4], 64, 64, 4
    $region5: #{tpu_custom_call.1} parent=1 // pred_fallthru
      _
    // Predicated region
    $region6: #{tpu_custom_call.1} parent=1 // pred_check
      _
    $region7: #{tpu_custom_call.1} parent=1 // pred_check_branch
      %25 = sbr.rel (0) target = $region9
    $region8: #{tpu_custom_call.1} parent=1 // pred_region
      %s26 = sadd.s32 0, 0
      %s27 = smul.u32 4, %s26
      %29 = vsyncadd [#allocation7], 0
      %s30 = smul.addr %s27, 4
      %s31 = scalar_lea.hbm %s1, %s30
      %s32 = sshll.u32 %s31, 4
      %s33 = int_to_ptr.hbm [resolvable:$true] %s32
      %s34 = sshll.u32 [#allocation6], 4
      %s35 = int_to_ptr.vmem [resolvable:$true] %s34
      %40 = dma.hbm_to_vmem [thread:$0]  %s33, 4096, %s35, [#allocation7], 256, 256, 16
    $region9: #{tpu_custom_call.1} parent=1 // pred_fallthru
      _
    // Predicated region
    $region10: #{tpu_custom_call.1} parent=1 // pred_check
      _
    $region11: #{tpu_custom_call.1} parent=1 // pred_check_branch
      %42 = sbr.rel (0) target = $region13
    $region12: #{tpu_custom_call.1} parent=1 // pred_region
      %s43 = sadd.s32 0, 0
      %s44 = smul.u32 64, %s43
      %46 = vsyncadd [#allocation7], 0
      %s47 = smul.addr %s44, 4
      %s48 = scalar_lea.hbm %s2, %s47
      %s49 = sshll.u32 %s48, 4
      %s50 = int_to_ptr.hbm [resolvable:$true] %s49
      %s51 = sshll.u32 [#allocation8], 4
      %s52 = int_to_ptr.vmem [resolvable:$true] %s51
      %57 = dma.hbm_to_vmem [thread:$0]  %s50, 4096, %s52, [#allocation7], 64, 64, 4
    $region13: #{tpu_custom_call.1} parent=1 // pred_fallthru
      _
    // Predicated region
    $region14: #{tpu_custom_call.1} parent=1 // pred_check
      _
    $region15: #{tpu_custom_call.1} parent=1 // pred_check_branch
      %59 = sbr.rel (0) target = $region17
    $region16: #{tpu_custom_call.1} parent=1 // pred_region
      %61 = dma.done [#allocation4], 128
    $region17: #{tpu_custom_call.1} parent=1 // pred_fallthru
      _
    // Predicated region
    $region18: #{tpu_custom_call.1} parent=1 // pred_check
      _
    $region19: #{tpu_custom_call.1} parent=1 // pred_check_branch
      %63 = sbr.rel (0) target = $region21
    $region20: #{tpu_custom_call.1} parent=1 // pred_region
      %65 = dma.done [#allocation7], 4096
    $region21: #{tpu_custom_call.1} parent=1 // pred_fallthru
      _
    // Predicated region
    $region22: #{tpu_custom_call.1} parent=1 // pred_check
      _
    $region23: #{tpu_custom_call.1} parent=1 // pred_check_branch
      %67 = sbr.rel (0) target = $region25
    $region24: #{tpu_custom_call.1} parent=1 // pred_region
      %69 = dma.done [#allocation7], 4096
    $region25: #{tpu_custom_call.1} parent=1 // pred_fallthru
      _
    %s70 = sadd.s32 0, 0
    %s71 = smul.u32 4, %s70
    %s72 = sadd.s32 0, 0
    %s73 = smul.u32 64, %s72
    %p74 = scmp.eq.s32.totalorder 0, 0
    // Predicated region
    $region26: #{tpu_custom_call.1} parent=1 // pred_check
      %p75 = pneg %p74
    $region27: #{tpu_custom_call.1} parent=1 // pred_check_branch
      %77 = sbr.rel (%p75) target = $region29
    $region28: #{tpu_custom_call.1} parent=1 // pred_region
      %78 = vst [vmem:[#allocation2] sm:$0xff] 0.0
      %79 = vst [vmem:[#allocation2 + $0x8] sm:$0xff] 0.0
    $region29: #{tpu_custom_call.1} parent=1 // pred_fallthru
      _
    %v80 = vld [vmem:[#allocation3] sm:$0xf]
    %v81 = vld [vmem:[#allocation3 + $0x4] sm:$0xf]
    %v82 = vld [vmem:[#allocation6] sm:$0xff]
    %v83 = vld [vmem:[#allocation6 + $0x8] sm:$0xff]
    %v84 = vld [vmem:[#allocation6 + $0x10] sm:$0xff]
    %v85 = vld [vmem:[#allocation6 + $0x18] sm:$0xff]
    %v86 = vld [vmem:[#allocation6 + $0x20] sm:$0xff]
    %v87 = vld [vmem:[#allocation6 + $0x28] sm:$0xff]
    %v88 = vld [vmem:[#allocation6 + $0x30] sm:$0xff]
    %v89 = vld [vmem:[#allocation6 + $0x38] sm:$0xff]
    %v90 = vld [vmem:[#allocation6 + $0x40] sm:$0xff]
    %v91 = vld [vmem:[#allocation6 + $0x48] sm:$0xff]
    %v92 = vld [vmem:[#allocation6 + $0x50] sm:$0xff]
    %v93 = vld [vmem:[#allocation6 + $0x58] sm:$0xff]
    %v94 = vld [vmem:[#allocation6 + $0x60] sm:$0xff]
    %v95 = vld [vmem:[#allocation6 + $0x68] sm:$0xff]
    %v96 = vld [vmem:[#allocation6 + $0x70] sm:$0xff]
    %v97 = vld [vmem:[#allocation6 + $0x78] sm:$0xff]
    %v98 = vld [vmem:[#allocation6 + $0x80] sm:$0xff]
    %v99 = vld [vmem:[#allocation6 + $0x88] sm:$0xff]
    %v100 = vld [vmem:[#allocation6 + $0x90] sm:$0xff]
    %v101 = vld [vmem:[#allocation6 + $0x98] sm:$0xff]
    %v102 = vld [vmem:[#allocation6 + $0xa0] sm:$0xff]
    %v103 = vld [vmem:[#allocation6 + $0xa8] sm:$0xff]
    %v104 = vld [vmem:[#allocation6 + $0xb0] sm:$0xff]
    %v105 = vld [vmem:[#allocation6 + $0xb8] sm:$0xff]
    %v106 = vld [vmem:[#allocation6 + $0xc0] sm:$0xff]
    %v107 = vld [vmem:[#allocation6 + $0xc8] sm:$0xff]
    %v108 = vld [vmem:[#allocation6 + $0xd0] sm:$0xff]
    %v109 = vld [vmem:[#allocation6 + $0xd8] sm:$0xff]
    %v110 = vld [vmem:[#allocation6 + $0xe0] sm:$0xff]
    %v111 = vld [vmem:[#allocation6 + $0xe8] sm:$0xff]
    %v112 = vld [vmem:[#allocation6 + $0xf0] sm:$0xff]
    %v113 = vld [vmem:[#allocation6 + $0xf8] sm:$0xff]
    %v116 = vunpack.c.l.b16 %v80
    %v117 = vunpack.c.l.b16 %v81
    %v118 = vpack.c.b16 %v117, %v116
    %v152 = vunpack.c.l.b16 %v82
    %v153 = vunpack.c.h.b16 %v82
    %v154 = vunpack.c.l.b16 %v83
    %v155 = vunpack.c.h.b16 %v83
    %v156 = vunpack.c.l.b16 %v84
    %v157 = vunpack.c.h.b16 %v84
    %v158 = vunpack.c.l.b16 %v85
    %v159 = vunpack.c.h.b16 %v85
    %v160 = vunpack.c.l.b16 %v86
    %v161 = vunpack.c.h.b16 %v86
    %v162 = vunpack.c.l.b16 %v87
    %v163 = vunpack.c.h.b16 %v87
    %v164 = vunpack.c.l.b16 %v88
    %v165 = vunpack.c.h.b16 %v88
    %v166 = vunpack.c.l.b16 %v89
    %v167 = vunpack.c.h.b16 %v89
    %v168 = vunpack.c.l.b16 %v90
    %v169 = vunpack.c.h.b16 %v90
    %v170 = vunpack.c.l.b16 %v91
    %v171 = vunpack.c.h.b16 %v91
    %v172 = vunpack.c.l.b16 %v92
    %v173 = vunpack.c.h.b16 %v92
    %v174 = vunpack.c.l.b16 %v93
    %v175 = vunpack.c.h.b16 %v93
    %v176 = vunpack.c.l.b16 %v94
    %v177 = vunpack.c.h.b16 %v94
    %v178 = vunpack.c.l.b16 %v95
    %v179 = vunpack.c.h.b16 %v95
    %v180 = vunpack.c.l.b16 %v96
    %v181 = vunpack.c.h.b16 %v96
    %v182 = vunpack.c.l.b16 %v97
    %v183 = vunpack.c.h.b16 %v97
    %v184 = vunpack.c.l.b16 %v98
    %v185 = vunpack.c.h.b16 %v98
    %v186 = vunpack.c.l.b16 %v99
    %v187 = vunpack.c.h.b16 %v99
    %v188 = vunpack.c.l.b16 %v100
    %v189 = vunpack.c.h.b16 %v100
    %v190 = vunpack.c.l.b16 %v101
    %v191 = vunpack.c.h.b16 %v101
    %v192 = vunpack.c.l.b16 %v102
    %v193 = vunpack.c.h.b16 %v102
    %v194 = vunpack.c.l.b16 %v103
    %v195 = vunpack.c.h.b16 %v103
    %v196 = vunpack.c.l.b16 %v104
    %v197 = vunpack.c.h.b16 %v104
    %v198 = vunpack.c.l.b16 %v105
    %v199 = vunpack.c.h.b16 %v105
    %v200 = vunpack.c.l.b16 %v106
    %v201 = vunpack.c.h.b16 %v106
    %v202 = vunpack.c.l.b16 %v107
    %v203 = vunpack.c.h.b16 %v107
    %v204 = vunpack.c.l.b16 %v108
    %v205 = vunpack.c.h.b16 %v108
    %v206 = vunpack.c.l.b16 %v109
    %v207 = vunpack.c.h.b16 %v109
    %v208 = vunpack.c.l.b16 %v110
    %v209 = vunpack.c.h.b16 %v110
    %v210 = vunpack.c.l.b16 %v111
    %v211 = vunpack.c.h.b16 %v111
    %v212 = vunpack.c.l.b16 %v112
    %v213 = vunpack.c.h.b16 %v112
    %v214 = vunpack.c.l.b16 %v113
    %v215 = vunpack.c.h.b16 %v113
    %v216 = vpack.c.b16 %v156, %v152
    %v217 = vpack.c.b16 %v157, %v153
    %v218 = vpack.c.b16 %v158, %v154
    %v219 = vpack.c.b16 %v159, %v155
    %v220 = vpack.c.b16 %v164, %v160
    %v221 = vpack.c.b16 %v165, %v161
    %v222 = vpack.c.b16 %v166, %v162
    %v223 = vpack.c.b16 %v167, %v163
    %v224 = vpack.c.b16 %v172, %v168
    %v225 = vpack.c.b16 %v173, %v169
    %v226 = vpack.c.b16 %v174, %v170
    %v227 = vpack.c.b16 %v175, %v171
    %v228 = vpack.c.b16 %v180, %v176
    %v229 = vpack.c.b16 %v181, %v177
    %v230 = vpack.c.b16 %v182, %v178
    %v231 = vpack.c.b16 %v183, %v179
    %v232 = vpack.c.b16 %v188, %v184
    %v233 = vpack.c.b16 %v189, %v185
    %v234 = vpack.c.b16 %v190, %v186
    %v235 = vpack.c.b16 %v191, %v187
    %v236 = vpack.c.b16 %v196, %v192
    %v237 = vpack.c.b16 %v197, %v193
    %v238 = vpack.c.b16 %v198, %v194
    %v239 = vpack.c.b16 %v199, %v195
    %v240 = vpack.c.b16 %v204, %v200
    %v241 = vpack.c.b16 %v205, %v201
    %v242 = vpack.c.b16 %v206, %v202
    %v243 = vpack.c.b16 %v207, %v203
    %v244 = vpack.c.b16 %v212, %v208
    %v245 = vpack.c.b16 %v213, %v209
    %v246 = vpack.c.b16 %v214, %v210
    %v247 = vpack.c.b16 %v215, %v211
    %280 = vmatpush.bf16.msra.mxu0 %v244
    %281 = vmatpush.bf16.msra.mxu0 %v240
    %282 = vmatpush.bf16.msra.mxu0 %v236
    %283 = vmatpush.bf16.msra.mxu0 %v232
    %284 = vmatpush.bf16.msra.mxu0 %v228
    %285 = vmatpush.bf16.msra.mxu0 %v224
    %286 = vmatpush.bf16.msra.mxu0 %v220
    %287 = vmatpush.bf16.msra.mxu0 %v216
    %288 = vmatmul.bf16.gmra.mxu0 %v118
    %v289 = vpop.f32.mrf.mxu0
    %v290 = vadd.f32 0.0, %v289
    %v291 = vpop.f32.mrf.mxu0
    %v292 = vadd.f32 0.0, %v291
    %293 = vdwg.mxu0
    %294 = vmatpush.bf16.msra.mxu0 %v245
    %295 = vmatpush.bf16.msra.mxu0 %v241
    %296 = vmatpush.bf16.msra.mxu0 %v237
    %297 = vmatpush.bf16.msra.mxu0 %v233
    %298 = vmatpush.bf16.msra.mxu0 %v229
    %299 = vmatpush.bf16.msra.mxu0 %v225
    %300 = vmatpush.bf16.msra.mxu0 %v221
    %301 = vmatpush.bf16.msra.mxu0 %v217
    %302 = vmatmul.bf16.gmra.mxu0 %v118
    %v303 = vpop.f32.mrf.mxu0
    %v304 = vadd.f32 0.0, %v303
    %v305 = vpop.f32.mrf.mxu0
    %v306 = vadd.f32 0.0, %v305
    %307 = vdwg.mxu0
    %308 = vmatpush.bf16.msra.mxu0 %v246
    %309 = vmatpush.bf16.msra.mxu0 %v242
    %310 = vmatpush.bf16.msra.mxu0 %v238
    %311 = vmatpush.bf16.msra.mxu0 %v234
    %312 = vmatpush.bf16.msra.mxu0 %v230
    %313 = vmatpush.bf16.msra.mxu0 %v226
    %314 = vmatpush.bf16.msra.mxu0 %v222
    %315 = vmatpush.bf16.msra.mxu0 %v218
    %316 = vmatmul.bf16.gmra.mxu0 %v118
    %v317 = vpop.f32.mrf.mxu0
    %v318 = vadd.f32 0.0, %v317
    %v319 = vpop.f32.mrf.mxu0
    %v320 = vadd.f32 0.0, %v319
    %321 = vdwg.mxu0
    %322 = vmatpush.bf16.msra.mxu0 %v247
    %323 = vmatpush.bf16.msra.mxu0 %v243
    %324 = vmatpush.bf16.msra.mxu0 %v239
    %325 = vmatpush.bf16.msra.mxu0 %v235
    %326 = vmatpush.bf16.msra.mxu0 %v231
    %327 = vmatpush.bf16.msra.mxu0 %v227
    %328 = vmatpush.bf16.msra.mxu0 %v223
    %329 = vmatpush.bf16.msra.mxu0 %v219
    %330 = vmatmul.bf16.gmra.mxu0 %v118
    %v331 = vpop.f32.mrf.mxu0
    %v332 = vadd.f32 0.0, %v331
    %v333 = vpop.f32.mrf.mxu0
    %v334 = vadd.f32 0.0, %v333
    %335 = vdwg.mxu0
    %v336 = vmax.f32 %v290, 0.0
    %v337 = vmax.f32 %v304, 0.0
    %v338 = vmax.f32 %v318, 0.0
    %v339 = vmax.f32 %v332, 0.0
    %v340 = vmax.f32 %v292, 0.0
    %v341 = vmax.f32 %v306, 0.0
    %v342 = vmax.f32 %v320, 0.0
    %v343 = vmax.f32 %v334, 0.0
    %v344 = vld [vmem:[#allocation2] sm:$0xff]
    %v345 = vld [vmem:[#allocation2 + $0x8] sm:$0xff]
    %v346 = vpack.c.bf16 %v340, %v336
    %v347 = vpack.c.bf16 %v341, %v337
    %v348 = vpack.c.bf16 %v342, %v338
    %v349 = vpack.c.bf16 %v343, %v339
    %v350 = vld [vmem:[#allocation8] sm:$0xf]
    %v351 = vld [vmem:[#allocation8 + $0x4] sm:$0xf]
    %v352 = vld [vmem:[#allocation8 + $0x8] sm:$0xf]
    %v353 = vld [vmem:[#allocation8 + $0xc] sm:$0xf]
    %v354 = vld [vmem:[#allocation8 + $0x10] sm:$0xf]
    %v355 = vld [vmem:[#allocation8 + $0x14] sm:$0xf]
    %v356 = vld [vmem:[#allocation8 + $0x18] sm:$0xf]
    %v357 = vld [vmem:[#allocation8 + $0x1c] sm:$0xf]
    %v358 = vld [vmem:[#allocation8 + $0x20] sm:$0xf]
    %v359 = vld [vmem:[#allocation8 + $0x24] sm:$0xf]
    %v360 = vld [vmem:[#allocation8 + $0x28] sm:$0xf]
    %v361 = vld [vmem:[#allocation8 + $0x2c] sm:$0xf]
    %v362 = vld [vmem:[#allocation8 + $0x30] sm:$0xf]
    %v363 = vld [vmem:[#allocation8 + $0x34] sm:$0xf]
    %v364 = vld [vmem:[#allocation8 + $0x38] sm:$0xf]
    %v365 = vld [vmem:[#allocation8 + $0x3c] sm:$0xf]
    %v366 = vld [vmem:[#allocation8 + $0x40] sm:$0xf]
    %v367 = vld [vmem:[#allocation8 + $0x44] sm:$0xf]
    %v368 = vld [vmem:[#allocation8 + $0x48] sm:$0xf]
    %v369 = vld [vmem:[#allocation8 + $0x4c] sm:$0xf]
    %v370 = vld [vmem:[#allocation8 + $0x50] sm:$0xf]
    %v371 = vld [vmem:[#allocation8 + $0x54] sm:$0xf]
    %v372 = vld [vmem:[#allocation8 + $0x58] sm:$0xf]
    %v373 = vld [vmem:[#allocation8 + $0x5c] sm:$0xf]
    %v374 = vld [vmem:[#allocation8 + $0x60] sm:$0xf]
    %v375 = vld [vmem:[#allocation8 + $0x64] sm:$0xf]
    %v376 = vld [vmem:[#allocation8 + $0x68] sm:$0xf]
    %v377 = vld [vmem:[#allocation8 + $0x6c] sm:$0xf]
    %v378 = vld [vmem:[#allocation8 + $0x70] sm:$0xf]
    %v379 = vld [vmem:[#allocation8 + $0x74] sm:$0xf]
    %v380 = vld [vmem:[#allocation8 + $0x78] sm:$0xf]
    %v381 = vld [vmem:[#allocation8 + $0x7c] sm:$0xf]
    %v382 = vld [vmem:[#allocation8 + $0x80] sm:$0xf]
    %v383 = vld [vmem:[#allocation8 + $0x84] sm:$0xf]
    %v384 = vld [vmem:[#allocation8 + $0x88] sm:$0xf]
    %v385 = vld [vmem:[#allocation8 + $0x8c] sm:$0xf]
    %v386 = vld [vmem:[#allocation8 + $0x90] sm:$0xf]
    %v387 = vld [vmem:[#allocation8 + $0x94] sm:$0xf]
    %v388 = vld [vmem:[#allocation8 + $0x98] sm:$0xf]
    %v389 = vld [vmem:[#allocation8 + $0x9c] sm:$0xf]
    %v390 = vld [vmem:[#allocation8 + $0xa0] sm:$0xf]
    %v391 = vld [vmem:[#allocation8 + $0xa4] sm:$0xf]
    %v392 = vld [vmem:[#allocation8 + $0xa8] sm:$0xf]
    %v393 = vld [vmem:[#allocation8 + $0xac] sm:$0xf]
    %v394 = vld [vmem:[#allocation8 + $0xb0] sm:$0xf]
    %v395 = vld [vmem:[#allocation8 + $0xb4] sm:$0xf]
    %v396 = vld [vmem:[#allocation8 + $0xb8] sm:$0xf]
    %v397 = vld [vmem:[#allocation8 + $0xbc] sm:$0xf]
    %v398 = vld [vmem:[#allocation8 + $0xc0] sm:$0xf]
    %v399 = vld [vmem:[#allocation8 + $0xc4] sm:$0xf]
    %v400 = vld [vmem:[#allocation8 + $0xc8] sm:$0xf]
    %v401 = vld [vmem:[#allocation8 + $0xcc] sm:$0xf]
    %v402 = vld [vmem:[#allocation8 + $0xd0] sm:$0xf]
    %v403 = vld [vmem:[#allocation8 + $0xd4] sm:$0xf]
    %v404 = vld [vmem:[#allocation8 + $0xd8] sm:$0xf]
    %v405 = vld [vmem:[#allocation8 + $0xdc] sm:$0xf]
    %v406 = vld [vmem:[#allocation8 + $0xe0] sm:$0xf]
    %v407 = vld [vmem:[#allocation8 + $0xe4] sm:$0xf]
    %v408 = vld [vmem:[#allocation8 + $0xe8] sm:$0xf]
    %v409 = vld [vmem:[#allocation8 + $0xec] sm:$0xf]
    %v410 = vld [vmem:[#allocation8 + $0xf0] sm:$0xf]
    %v411 = vld [vmem:[#allocation8 + $0xf4] sm:$0xf]
    %v412 = vld [vmem:[#allocation8 + $0xf8] sm:$0xf]
    %v413 = vld [vmem:[#allocation8 + $0xfc] sm:$0xf]
    %v478 = vunpack.c.l.b16 %v350
    %v479 = vunpack.c.l.b16 %v351
    %v480 = vunpack.c.l.b16 %v352
    %v481 = vunpack.c.l.b16 %v353
    %v482 = vunpack.c.l.b16 %v354
    %v483 = vunpack.c.l.b16 %v355
    %v484 = vunpack.c.l.b16 %v356
    %v485 = vunpack.c.l.b16 %v357
    %v486 = vunpack.c.l.b16 %v358
    %v487 = vunpack.c.l.b16 %v359
    %v488 = vunpack.c.l.b16 %v360
    %v489 = vunpack.c.l.b16 %v361
    %v490 = vunpack.c.l.b16 %v362
    %v491 = vunpack.c.l.b16 %v363
    %v492 = vunpack.c.l.b16 %v364
    %v493 = vunpack.c.l.b16 %v365
    %v494 = vunpack.c.l.b16 %v366
    %v495 = vunpack.c.l.b16 %v367
    %v496 = vunpack.c.l.b16 %v368
    %v497 = vunpack.c.l.b16 %v369
    %v498 = vunpack.c.l.b16 %v370
    %v499 = vunpack.c.l.b16 %v371
    %v500 = vunpack.c.l.b16 %v372
    %v501 = vunpack.c.l.b16 %v373
    %v502 = vunpack.c.l.b16 %v374
    %v503 = vunpack.c.l.b16 %v375
    %v504 = vunpack.c.l.b16 %v376
    %v505 = vunpack.c.l.b16 %v377
    %v506 = vunpack.c.l.b16 %v378
    %v507 = vunpack.c.l.b16 %v379
    %v508 = vunpack.c.l.b16 %v380
    %v509 = vunpack.c.l.b16 %v381
    %v510 = vunpack.c.l.b16 %v382
    %v511 = vunpack.c.l.b16 %v383
    %v512 = vunpack.c.l.b16 %v384
    %v513 = vunpack.c.l.b16 %v385
    %v514 = vunpack.c.l.b16 %v386
    %v515 = vunpack.c.l.b16 %v387
    %v516 = vunpack.c.l.b16 %v388
    %v517 = vunpack.c.l.b16 %v389
    %v518 = vunpack.c.l.b16 %v390
    %v519 = vunpack.c.l.b16 %v391
    %v520 = vunpack.c.l.b16 %v392
    %v521 = vunpack.c.l.b16 %v393
    %v522 = vunpack.c.l.b16 %v394
    %v523 = vunpack.c.l.b16 %v395
    %v524 = vunpack.c.l.b16 %v396
    %v525 = vunpack.c.l.b16 %v397
    %v526 = vunpack.c.l.b16 %v398
    %v527 = vunpack.c.l.b16 %v399
    %v528 = vunpack.c.l.b16 %v400
    %v529 = vunpack.c.l.b16 %v401
    %v530 = vunpack.c.l.b16 %v402
    %v531 = vunpack.c.l.b16 %v403
    %v532 = vunpack.c.l.b16 %v404
    %v533 = vunpack.c.l.b16 %v405
    %v534 = vunpack.c.l.b16 %v406
    %v535 = vunpack.c.l.b16 %v407
    %v536 = vunpack.c.l.b16 %v408
    %v537 = vunpack.c.l.b16 %v409
    %v538 = vunpack.c.l.b16 %v410
    %v539 = vunpack.c.l.b16 %v411
    %v540 = vunpack.c.l.b16 %v412
    %v541 = vunpack.c.l.b16 %v413
    %v542 = vpack.c.b16 %v479, %v478
    %v543 = vpack.c.b16 %v481, %v480
    %v544 = vpack.c.b16 %v483, %v482
    %v545 = vpack.c.b16 %v485, %v484
    %v546 = vpack.c.b16 %v487, %v486
    %v547 = vpack.c.b16 %v489, %v488
    %v548 = vpack.c.b16 %v491, %v490
    %v549 = vpack.c.b16 %v493, %v492
    %v550 = vpack.c.b16 %v495, %v494
    %v551 = vpack.c.b16 %v497, %v496
    %v552 = vpack.c.b16 %v499, %v498
    %v553 = vpack.c.b16 %v501, %v500
    %v554 = vpack.c.b16 %v503, %v502
    %v555 = vpack.c.b16 %v505, %v504
    %v556 = vpack.c.b16 %v507, %v506
    %v557 = vpack.c.b16 %v509, %v508
    %v558 = vpack.c.b16 %v511, %v510
    %v559 = vpack.c.b16 %v513, %v512
    %v560 = vpack.c.b16 %v515, %v514
    %v561 = vpack.c.b16 %v517, %v516
    %v562 = vpack.c.b16 %v519, %v518
    %v563 = vpack.c.b16 %v521, %v520
    %v564 = vpack.c.b16 %v523, %v522
    %v565 = vpack.c.b16 %v525, %v524
    %v566 = vpack.c.b16 %v527, %v526
    %v567 = vpack.c.b16 %v529, %v528
    %v568 = vpack.c.b16 %v531, %v530
    %v569 = vpack.c.b16 %v533, %v532
    %v570 = vpack.c.b16 %v535, %v534
    %v571 = vpack.c.b16 %v537, %v536
    %v572 = vpack.c.b16 %v539, %v538
    %v573 = vpack.c.b16 %v541, %v540
    %606 = vmatpush.bf16.msra.mxu0 %v549
    %607 = vmatpush.bf16.msra.mxu0 %v548
    %608 = vmatpush.bf16.msra.mxu0 %v547
    %609 = vmatpush.bf16.msra.mxu0 %v546
    %610 = vmatpush.bf16.msra.mxu0 %v545
    %611 = vmatpush.bf16.msra.mxu0 %v544
    %612 = vmatpush.bf16.msra.mxu0 %v543
    %613 = vmatpush.bf16.msra.mxu0 %v542
    %614 = vmatmul.bf16.gmra.mxu0 %v346
    %v615 = vpop.f32.mrf.mxu0
    %v616 = vadd.f32 0.0, %v615
    %v617 = vpop.f32.mrf.mxu0
    %v618 = vadd.f32 0.0, %v617
    %619 = vdwg.mxu0
    %620 = vmatpush.bf16.msra.mxu0 %v557
    %621 = vmatpush.bf16.msra.mxu0 %v556
    %622 = vmatpush.bf16.msra.mxu0 %v555
    %623 = vmatpush.bf16.msra.mxu0 %v554
    %624 = vmatpush.bf16.msra.mxu0 %v553
    %625 = vmatpush.bf16.msra.mxu0 %v552
    %626 = vmatpush.bf16.msra.mxu0 %v551
    %627 = vmatpush.bf16.msra.mxu0 %v550
    %628 = vmatmul.bf16.gmra.mxu0 %v347
    %v629 = vpop.f32.mrf.mxu0
    %v630 = vadd.f32 %v616, %v629
    %v631 = vpop.f32.mrf.mxu0
    %v632 = vadd.f32 %v618, %v631
    %633 = vdwg.mxu0
    %634 = vmatpush.bf16.msra.mxu0 %v565
    %635 = vmatpush.bf16.msra.mxu0 %v564
    %636 = vmatpush.bf16.msra.mxu0 %v563
    %637 = vmatpush.bf16.msra.mxu0 %v562
    %638 = vmatpush.bf16.msra.mxu0 %v561
    %639 = vmatpush.bf16.msra.mxu0 %v560
    %640 = vmatpush.bf16.msra.mxu0 %v559
    %641 = vmatpush.bf16.msra.mxu0 %v558
    %642 = vmatmul.bf16.gmra.mxu0 %v348
    %v643 = vpop.f32.mrf.mxu0
    %v644 = vadd.f32 %v630, %v643
    %v645 = vpop.f32.mrf.mxu0
    %v646 = vadd.f32 %v632, %v645
    %647 = vdwg.mxu0
    %648 = vmatpush.bf16.msra.mxu0 %v573
    %649 = vmatpush.bf16.msra.mxu0 %v572
    %650 = vmatpush.bf16.msra.mxu0 %v571
    %651 = vmatpush.bf16.msra.mxu0 %v570
    %652 = vmatpush.bf16.msra.mxu0 %v569
    %653 = vmatpush.bf16.msra.mxu0 %v568
    %654 = vmatpush.bf16.msra.mxu0 %v567
    %655 = vmatpush.bf16.msra.mxu0 %v566
    %656 = vmatmul.bf16.gmra.mxu0 %v349
    %v657 = vpop.f32.mrf.mxu0
    %v658 = vadd.f32 %v644, %v657
    %v659 = vpop.f32.mrf.mxu0
    %v660 = vadd.f32 %v646, %v659
    %661 = vdwg.mxu0
    %v662 = vadd.f32 %v344, %v658
    %v663 = vadd.f32 %v345, %v660
    %664 = vst [vmem:[#allocation2] sm:$0xff] %v662
    %665 = vst [vmem:[#allocation2 + $0x8] sm:$0xff] %v663
    // Predicated region
    $region30: #{tpu_custom_call.1} parent=1 // pred_check
      %p666 = pneg %p74
    $region31: #{tpu_custom_call.1} parent=1 // pred_check_branch
      %668 = sbr.rel (%p666) target = $region33
    $region32: #{tpu_custom_call.1} parent=1 // pred_region
      %v669 = vld [vmem:[#allocation2] sm:$0xff]
      %v670 = vld [vmem:[#allocation2 + $0x8] sm:$0xff]
      %671 = vst [vmem:[#allocation9] sm:$0xff] %v669
      %672 = vst [vmem:[#allocation9 + $0x8] sm:$0xff] %v670
    $region33: #{tpu_custom_call.1} parent=1 // pred_fallthru
      _
    // Predicated region
    $region34: #{tpu_custom_call.1} parent=1 // pred_check
      _
    $region35: #{tpu_custom_call.1} parent=1 // pred_check_branch
      %674 = sbr.rel (0) target = $region37
    $region36: #{tpu_custom_call.1} parent=1 // pred_region
      %676 = vsyncadd [#allocation5], 0
      %s677 = sshll.u32 [#allocation9], 4
      %s678 = int_to_ptr.vmem [resolvable:$true] %s677
      %s679 = sshll.u32 %s3, 4
      %s680 = int_to_ptr.hbm [resolvable:$true] %s679
      %685 = dma.vmem_to_hbm [thread:$0]  %s678, 256, %s680, [#allocation5], 128, 128, 8
    $region37: #{tpu_custom_call.1} parent=1 // pred_fallthru
      _
    // Predicated region
    $region38: #{tpu_custom_call.1} parent=1 // pred_check
      _
    $region39: #{tpu_custom_call.1} parent=1 // pred_check_branch
      %687 = sbr.rel (0) target = $region41
    $region40: #{tpu_custom_call.1} parent=1 // pred_region
      %689 = dma.done [#allocation5], 256
    $region41: #{tpu_custom_call.1} parent=1 // pred_fallthru
      _
    %690 = vsyncpa [#allocation4], 1
    %691 = vsyncpa [#allocation7], 1
    %692 = vsyncpa [#allocation5], 1

</llo_original>
